<compile_context>
chip_gen: v5e
topology: v5e:2x2
jax: 0.10.0
libtpu: 0.0.40
codegen_flags: <defaults>
</compile_context>

<pallas_src>
import functools

import jax
import jax.numpy as jnp
from jax import lax
from jax.experimental import pallas as pl
from jax.experimental.pallas import tpu as pltpu


def _triplet_kernel(a_ref, p_ref, n_ref, o_ref, acc_ref, *, margin, batch,
                    tile_rows, needs_mask, mxu_reduce):
    c = pl.program_id(0)           # parallel (per-TensorCore) batch slice
    i = pl.program_id(1)           # sequential reduction axis within slice
    steps = pl.num_programs(1)

    @pl.when(i == 0)
    def _init():
        acc_ref[...] = jnp.zeros_like(acc_ref)

    # Stream (TB, D) tiles in their storage dtype; do the math in f32.
    a = a_ref[...].astype(jnp.float32)
    p = p_ref[...].astype(jnp.float32)
    n = n_ref[...].astype(jnp.float32)

    # |a-p|^2 - |a-n|^2 == sum_d (p - n) * (p + n - 2a)   (single reduction)
    diff = p - n
    ssum = p + n - 2.0 * a
    prod = diff * ssum

    if mxu_reduce:
        # Lane reduce on the (otherwise idle) MXU — used on v7x where the
        # higher HBM bandwidth leaves less XLU slack per byte.
        ones = jnp.ones((prod.shape[1], 1), jnp.float32)
        dd = jnp.dot(prod, ones, preferred_element_type=jnp.float32)
    else:
        dd = jnp.sum(prod, axis=1, keepdims=True)        # (TB, 1)

    losses = jnp.maximum(dd + jnp.float32(margin), 0.0)   # (TB, 1)

    # Mask padded rows (ragged last tile and/or clamped duplicate blocks of a
    # padded parallel split).  Static branch: only emitted when needed.
    if needs_mask:
        step = c * steps + i
        row_ids = step * tile_rows + lax.broadcasted_iota(
            jnp.int32, (tile_rows, 1), 0)
        losses = jnp.where(row_ids < batch, losses, 0.0)

    # Pure elementwise (VPU) accumulation — no per-step cross-sublane reduce.
    acc_ref[...] += losses

    @pl.when(i == steps - 1)
    def _finalize():
        tot = jnp.sum(acc_ref[...], axis=0, keepdims=True)   # (1, 1)
        # Lane-dense, legally-tiled per-core output block; wrapper extracts
        # element [0, 0] of each core's block.
        o_ref[...] = jnp.broadcast_to(tot, o_ref.shape)


def _hw_config():
    """Per-generation knobs: VMEM capacity, #TensorCores, MXU-reduce flag."""
    vmem_cap = 64 << 20          # conservative default (v7x per-TC VMEM)
    num_cores = 1
    mxu_reduce = False
    try:
        info = pltpu.get_tpu_info()
        vmem_cap = int(getattr(info, "vmem_capacity_bytes", vmem_cap))
    except Exception:
        pass
    try:
        kind = jax.devices()[0].device_kind.lower()
        if "v7" in kind or "7x" in kind:
            num_cores = 2        # v7x: 2 TensorCores per chip
            mxu_reduce = True
    except Exception:
        pass
    return vmem_cap, num_cores, mxu_reduce


def _per_row_vmem_bytes(dim, itemsize, bufs):
    # 3 pipelined input tiles in storage dtype + ~4 f32 (TB,D) temporaries
    # (upcasts / diff / sum / prod) + up to 3 lane-padded (TB,1) f32 vectors
    # (row distance, losses, accumulator).
    return 3 * bufs * dim * itemsize + 4 * dim * 4 + 3 * 128 * 4


def _choose_tile_rows(batch, dim, itemsize, budget_bytes, sublane,
                      row_cap=8192):
    """Largest batch tile whose full VMEM footprint fits the budget."""
    per_row = _per_row_vmem_bytes(dim, itemsize, bufs=2)
    max_rows = max(sublane, budget_bytes // per_row)
    max_rows = min(max_rows, row_cap)
    if batch <= max_rows:
        return batch                       # one tile; block == full dim legal
    return max(sublane, (max_rows // sublane) * sublane)


def triplet_loss(anchor, positive, negative, *, margin, size_average=True,
                 tile_rows=None, num_cores=None):
    """Pallas TPU implementation of TripletLoss.forward."""
    B, D = anchor.shape
    assert positive.shape == (B, D) and negative.shape == (B, D)
    itemsize = jnp.dtype(anchor.dtype).itemsize
    sublane = max(8, 32 // itemsize)       # 8 f32 / 16 bf16 / 32 int8

    vmem_cap, hw_cores, mxu_reduce = _hw_config()
    tile_budget = min(32 << 20, vmem_cap // 4)   # ~32 MiB on 128 MiB parts,
                                                 # ~16 MiB on v7x (64 MiB/TC)

    tb = _choose_tile_rows(B, D, itemsize, tile_budget, sublane)
    if tile_rows is not None:              # test / tuning override
        tb = min(int(tile_rows), B)
    total_steps = pl.cdiv(B, tb)

    cores = hw_cores if num_cores is None else int(num_cores)
    num_par = max(1, min(cores, total_steps))
    steps_per_core = pl.cdiv(total_steps, num_par)
    # Mask needed for ragged last tile and/or duplicated (clamped) blocks.
    needs_mask = (num_par * steps_per_core * tb != B)

    last_block = total_steps - 1

    def in_index(c, i):
        # Clamp so padded (c, i) steps re-read the last block; their rows are
        # masked to zero inside the kernel.
        return (jnp.minimum(c * steps_per_core + i, last_block), 0)

    # Deeper pipelining only pays off for tiny tiles on long grids.
    tile_bytes = tb * D * itemsize
    deep = (tile_bytes < (512 * 1024)) and (total_steps >= 8)

    def make_in_spec():
        if deep:
            try:
                return pl.BlockSpec((tb, D), in_index,
                                    pipeline_mode=pl.Buffered(3))
            except Exception:
                pass
        return pl.BlockSpec((tb, D), in_index)

    in_spec = make_in_spec()
    bufs = 3 if deep else 2

    kernel = functools.partial(
        _triplet_kernel,
        margin=float(margin),
        batch=B,
        tile_rows=tb,
        needs_mask=needs_mask,
        mxu_reduce=mxu_reduce,
    )

    # Explicit VMEM budget, now including f32 temporaries and lane-padded
    # (TB,1) vectors, clamped below the per-generation capacity.
    vmem_needed = tb * _per_row_vmem_bytes(D, itemsize, bufs) + (2 << 20)
    vmem_upper = max(16 << 20, vmem_cap * 45 // 100)
    vmem_limit = int(min(vmem_upper, max(16 << 20, vmem_needed)))

    out = pl.pallas_call(
        kernel,
        out_shape=jax.ShapeDtypeStruct((num_par * 8, 128), jnp.float32),
        grid_spec=pltpu.PrefetchScalarGridSpec(
            num_scalar_prefetch=0,
            grid=(num_par, steps_per_core),
            in_specs=[in_spec, in_spec, in_spec],
            out_specs=pl.BlockSpec((8, 128), lambda c, i: (c, 0)),
            scratch_shapes=[pltpu.VMEM((tb, 1), jnp.float32)],
        ),
        compiler_params=pltpu.CompilerParams(
            dimension_semantics=("parallel", "arbitrary"),
            vmem_limit_bytes=vmem_limit,
        ),
        cost_estimate=pl.CostEstimate(
            flops=5 * B * D + 2 * B,
            transcendentals=0,
            bytes_accessed=3 * B * D * itemsize + num_par * 8 * 128 * 4,
        ),
    )(anchor, positive, negative)

    partials = out[0::8, 0]                # one partial sum per parallel slice
    total = jnp.sum(partials)
    if size_average:
        total = total / jnp.float32(B)
    return total


def triplet_loss_ref(anchor, positive, negative, *, margin, size_average=True):
    """Pure-JAX reference mirroring the PyTorch module (f32 accumulation)."""
    a = anchor.astype(jnp.float32)
    p = positive.astype(jnp.float32)
    n = negative.astype(jnp.float32)
    dp = jnp.sum((a - p) ** 2, axis=1)
    dn = jnp.sum((a - n) ** 2, axis=1)
    losses = jax.nn.relu(dp - dn + margin)
    return jnp.mean(losses) if size_average else jnp.sum(losses)


if __name__ == "__main__":
    key = jax.random.PRNGKey(0)
    k1, k2, k3 = jax.random.split(key, 3)
    margin = 1.0

    # --- Test 1: f32, single tile, mean reduction -------------------------
    B, D = 8, 32
    a = jax.random.normal(k1, (B, D), dtype=jnp.float32)
    p = jax.random.normal(k2, (B, D), dtype=jnp.float32)
    n = jax.random.normal(k3, (B, D), dtype=jnp.float32)
    out = jax.block_until_ready(
        triplet_loss(a, p, n, margin=margin, size_average=True))
    ref = triplet_loss_ref(a, p, n, margin=margin, size_average=True)
    assert jnp.allclose(out, ref, rtol=1e-4, atol=1e-4), (out, ref)

    # --- Test 2: f32, forced small tile -> multi-step grid, ragged tail, sum
    B2, D2 = 20, 32
    a2 = jax.random.normal(k1, (B2, D2), dtype=jnp.float32)
    p2 = jax.random.normal(k2, (B2, D2), dtype=jnp.float32)
    n2 = jax.random.normal(k3, (B2, D2), dtype=jnp.float32)
    out2 = jax.block_until_ready(
        triplet_loss(a2, p2, n2, margin=margin, size_average=False,
                     tile_rows=8))
    ref2 = triplet_loss_ref(a2, p2, n2, margin=margin, size_average=False)
    assert jnp.allclose(out2, ref2, rtol=1e-4, atol=1e-4), (out2, ref2)

    # --- Test 3: bf16 streaming inputs, f32 accumulation, mean ------------
    B3, D3 = 16, 128
    a3 = jax.random.normal(k1, (B3, D3), dtype=jnp.bfloat16)
    p3 = jax.random.normal(k2, (B3, D3), dtype=jnp.bfloat16)
    n3 = jax.random.normal(k3, (B3, D3), dtype=jnp.bfloat16)
    out3 = jax.block_until_ready(
        triplet_loss(a3, p3, n3, margin=margin, size_average=True))
    ref3 = triplet_loss_ref(a3, p3, n3, margin=margin, size_average=True)
    assert jnp.allclose(out3, ref3, rtol=1e-3, atol=1e-3), (out3, ref3)

    # --- Test 4: forced 2-way parallel partial sums (v7x path), mean ------
    B4, D4 = 24, 64
    a4 = jax.random.normal(k1, (B4, D4), dtype=jnp.float32)
    p4 = jax.random.normal(k2, (B4, D4), dtype=jnp.float32)
    n4 = jax.random.normal(k3, (B4, D4), dtype=jnp.float32)
    out4 = jax.block_until_ready(
        triplet_loss(a4, p4, n4, margin=margin, size_average=True,
                     tile_rows=8, num_cores=2))
    ref4 = triplet_loss_ref(a4, p4, n4, margin=margin, size_average=True)
    assert jnp.allclose(out4, ref4, rtol=1e-4, atol=1e-4), (out4, ref4)

    print("KERNEL_OK")
</pallas_src>

<mosaic_0001>
module attributes {stable_mosaic.version = 11 : i64} {
  func.func @_triplet_kernel(%arg0: i32, %arg1: i32, %arg2: memref<8x32xf32, #tpu.memory_space<vmem>>, %arg3: memref<8x32xf32, #tpu.memory_space<vmem>>, %arg4: memref<8x32xf32, #tpu.memory_space<vmem>>, %arg5: memref<8x128xf32, #tpu.memory_space<vmem>>, %arg6: memref<8x1xf32, #tpu.memory_space<vmem>>) attributes {dimension_semantics = [#tpu.dimension_semantics<parallel>, #tpu.dimension_semantics<arbitrary>], iteration_bounds = array<i64: 1, 1>, scalar_prefetch = 0 : i64, scratch_operands = 1 : i64, tpu.core_type = #tpu.core_type<tc>, window_params = [{transform_indices = @transform_0, window_bounds = array<i64: 8, 32>}, {transform_indices = @transform_1, window_bounds = array<i64: 8, 32>}, {transform_indices = @transform_2, window_bounds = array<i64: 8, 32>}, {transform_indices = @transform_3, window_bounds = array<i64: 8, 128>}]} {
    %c0_i32 = arith.constant 0 : i32
    %0 = arith.cmpi eq, %arg1, %c0_i32 : i32
    %1 = arith.extui %0 : i1 to i32
    %c0_i32_0 = arith.constant 0 : i32
    %2 = arith.cmpi ne, %1, %c0_i32_0 : i32
    scf.if %2 {
      %cst_15 = arith.constant 0.000000e+00 : f32
      %24 = vector.broadcast %cst_15 : f32 to vector<8x1xf32>
      %c0_16 = arith.constant 0 : index
      %c0_17 = arith.constant 0 : index
      %25 = vector.load %arg6[%c0_16, %c0_17] : memref<8x1xf32, #tpu.memory_space<vmem>>, vector<8x1xf32>
      tpu.vector_store %arg6[%c0_16, %c0_17], %24 {strides = array<i32>} : memref<8x1xf32, #tpu.memory_space<vmem>>, vector<8x1xf32>,
    } else {
    }
    %c0 = arith.constant 0 : index
    %c0_1 = arith.constant 0 : index
    %3 = vector.load %arg2[%c0, %c0_1] : memref<8x32xf32, #tpu.memory_space<vmem>>, vector<8x32xf32>
    %c0_2 = arith.constant 0 : index
    %c0_3 = arith.constant 0 : index
    %4 = vector.load %arg3[%c0_2, %c0_3] : memref<8x32xf32, #tpu.memory_space<vmem>>, vector<8x32xf32>
    %c0_4 = arith.constant 0 : index
    %c0_5 = arith.constant 0 : index
    %5 = vector.load %arg4[%c0_4, %c0_5] : memref<8x32xf32, #tpu.memory_space<vmem>>, vector<8x32xf32>
    %6 = arith.subf %4, %5 : vector<8x32xf32>
    %7 = arith.addf %4, %5 : vector<8x32xf32>
    %cst = arith.constant 2.000000e+00 : f32
    %8 = vector.broadcast %cst : f32 to vector<8x32xf32>
    %9 = arith.mulf %8, %3 : vector<8x32xf32>
    %10 = arith.subf %7, %9 : vector<8x32xf32>
    %11 = arith.mulf %6, %10 : vector<8x32xf32>
    %cst_6 = arith.constant dense<0.000000e+00> : vector<8xf32>
    %12 = vector.multi_reduction <add>, %11, %cst_6 [1] : vector<8x32xf32> to vector<8xf32>
    %13 = vector.shape_cast %12 : vector<8xf32> to vector<8x1xf32>
    %cst_7 = arith.constant 1.000000e+00 : f32
    %14 = vector.broadcast %cst_7 : f32 to vector<8x1xf32>
    %15 = arith.addf %13, %14 : vector<8x1xf32>
    %cst_8 = arith.constant 0.000000e+00 : f32
    %16 = vector.broadcast %cst_8 : f32 to vector<8x1xf32>
    %17 = arith.maximumf %15, %16 : vector<8x1xf32>
    %c0_9 = arith.constant 0 : index
    %c0_10 = arith.constant 0 : index
    %18 = vector.load %arg6[%c0_9, %c0_10] : memref<8x1xf32, #tpu.memory_space<vmem>>, vector<8x1xf32>
    %19 = arith.addf %18, %17 : vector<8x1xf32>
    %c0_11 = arith.constant 0 : index
    %c0_12 = arith.constant 0 : index
    %20 = vector.load %arg6[%c0_11, %c0_12] : memref<8x1xf32, #tpu.memory_space<vmem>>, vector<8x1xf32>
    tpu.vector_store %arg6[%c0_11, %c0_12], %19 {strides = array<i32>} : memref<8x1xf32, #tpu.memory_space<vmem>>, vector<8x1xf32>,
    %c0_i32_13 = arith.constant 0 : i32
    %21 = arith.cmpi eq, %arg1, %c0_i32_13 : i32
    %22 = arith.extui %21 : i1 to i32
    %c0_i32_14 = arith.constant 0 : i32
    %23 = arith.cmpi ne, %22, %c0_i32_14 : i32
    scf.if %23 {
      %c0_15 = arith.constant 0 : index
      %c0_16 = arith.constant 0 : index
      %24 = vector.load %arg6[%c0_15, %c0_16] : memref<8x1xf32, #tpu.memory_space<vmem>>, vector<8x1xf32>
      %cst_17 = arith.constant dense<0.000000e+00> : vector<1xf32>
      %25 = vector.multi_reduction <add>, %24, %cst_17 [0] : vector<8x1xf32> to vector<1xf32>
      %26 = vector.shape_cast %25 : vector<1xf32> to vector<1x1xf32>
      %27 = vector.shape_cast %26 : vector<1x1xf32> to vector<1x1xf32>
      %28 = vector.broadcast %27 : vector<1x1xf32> to vector<8x128xf32>
      %c0_18 = arith.constant 0 : index
      %c0_19 = arith.constant 0 : index
      %29 = vector.load %arg5[%c0_18, %c0_19] : memref<8x128xf32, #tpu.memory_space<vmem>>, vector<8x128xf32>
      tpu.vector_store %arg5[%c0_18, %c0_19], %28 {strides = array<i32>} : memref<8x128xf32, #tpu.memory_space<vmem>>, vector<8x128xf32>,
    } else {
    }
    return
  }
  func.func @transform_0(%arg0: i32, %arg1: i32) -> (i32, i32) {
    %c1_i32 = arith.constant 1 : i32
    %0 = arith.muli %arg0, %c1_i32 : i32
    %1 = arith.addi %0, %arg1 : i32
    %c0_i32 = arith.constant 0 : i32
    %2 = arith.minsi %1, %c0_i32 : i32
    %c0_i32_0 = arith.constant 0 : i32
    %c0_i32_1 = arith.constant 0 : i32
    return %2, %c0_i32_0 : i32, i32
  }
  func.func @transform_1(%arg0: i32, %arg1: i32) -> (i32, i32) {
    %c1_i32 = arith.constant 1 : i32
    %0 = arith.muli %arg0, %c1_i32 : i32
    %1 = arith.addi %0, %arg1 : i32
    %c0_i32 = arith.constant 0 : i32
    %2 = arith.minsi %1, %c0_i32 : i32
    %c0_i32_0 = arith.constant 0 : i32
    %c0_i32_1 = arith.constant 0 : i32
    return %2, %c0_i32_0 : i32, i32
  }
  func.func @transform_2(%arg0: i32, %arg1: i32) -> (i32, i32) {
    %c1_i32 = arith.constant 1 : i32
    %0 = arith.muli %arg0, %c1_i32 : i32
    %1 = arith.addi %0, %arg1 : i32
    %c0_i32 = arith.constant 0 : i32
    %2 = arith.minsi %1, %c0_i32 : i32
    %c0_i32_0 = arith.constant 0 : i32
    %c0_i32_1 = arith.constant 0 : i32
    return %2, %c0_i32_0 : i32, i32
  }
  func.func @transform_3(%arg0: i32, %arg1: i32) -> (i32, i32) {
    %c0_i32 = arith.constant 0 : i32
    %c0_i32_0 = arith.constant 0 : i32
    return %arg0, %c0_i32 : i32, i32
  }
}

</mosaic_0001>

<llo_original>
// kernel: tpu_custom_call.1
$region0: #{tpu_custom_call.1}
  #allocation0 [shape = 'u32[]', space=smem, size = 0x4, offset = 0x4, fixed_abs, tag = 'smem constant byte address 0x4 - core index']
  #allocation1 [shape = 'u32[72,128]{1,0:T(1,128)}', space=vmem, size = 0x9000, scoped, tag = 'internal scratch']
  #allocation2 [shape = 'f32[8,1]{1,0:T(8,128)}', space=vmem, size = 0x1000, scoped, tag = 'scratch operand']
  %s0 = inlined_call_operand.hbm [shape: f32[8,32], index: 0, kind: input, shape index: {}]
  %s1 = inlined_call_operand.hbm [shape: f32[8,32], index: 1, kind: input, shape index: {}]
  %s2 = inlined_call_operand.hbm [shape: f32[8,32], index: 2, kind: input, shape index: {}]
  %s3 = inlined_call_operand.hbm [shape: f32[8,128], index: 3, kind: output, shape index: {}]
  %s4 = sld [smem:[#allocation0]]
  $region42: #{tpu_custom_call.1} parent=0
    _
  %s6 = ssub.s32 1, %s4
  %s7 = scalar_select 0, %s6, %s4
  $region1: #{tpu_custom_call.1} parent=0
    #allocation3 [shape = 'u8[4096]{0}', space=vmem, size = 0x1000, scoped, tag = 'input window, operand 0, single buffered']
    #allocation4 [shape = 's32[1]{0}', space=sflag, size = 0x4, scoped, tag = 'scoped memory for tpu_custom_call.1']
    #allocation5 [shape = 's32[1]{0}', space=sflag, size = 0x4, scoped, tag = 'scoped memory for tpu_custom_call.1']
    #allocation6 [shape = 'u8[4096]{0}', space=vmem, size = 0x1000, scoped, tag = 'input window, operand 1, single buffered']
    #allocation7 [shape = 's32[1]{0}', space=sflag, size = 0x4, scoped, tag = 'scoped memory for tpu_custom_call.1']
    #allocation8 [shape = 'u8[4096]{0}', space=vmem, size = 0x1000, scoped, tag = 'input window, operand 2, single buffered']
    #allocation9 [shape = 'u8[4096]{0}', space=vmem, size = 0x1000, scoped, tag = 'output window, operand 0, single buffered']
    %8 = vsyncpa [#allocation4], 0
    %9 = vsyncpa [#allocation7], 0
    %10 = vsyncpa [#allocation5], 0
    // Predicated region
    $region2: #{tpu_custom_call.1} parent=1 // pred_check
      _
    $region3: #{tpu_custom_call.1} parent=1 // pred_check_branch
      %12 = sbr.rel (0) target = $region5
    $region4: #{tpu_custom_call.1} parent=1 // pred_region
      %s13 = sadd.s32 0, 0
      %p14 = scmp.lt.s32.totalorder %s13, 0
      %s15 = scalar_select %p14, %s13, 0
      %17 = vsyncadd [#allocation4], 0
      %s18 = smul.addr %s15, 8
      %s19 = scalar_lea.hbm %s0, %s18
      %s21 = sshll.u32 %s19, 4
      %s22 = int_to_ptr.hbm [resolvable:$true] %s21
      %s23 = sshll.u32 [#allocation3], 4
      %s24 = int_to_ptr.vmem [resolvable:$true] %s23
      %26 = dma.hbm_to_vmem [thread:$0]  %s22, 128, %s24, [#allocation4]
    $region5: #{tpu_custom_call.1} parent=1 // pred_fallthru
      _
    // Predicated region
    $region6: #{tpu_custom_call.1} parent=1 // pred_check
      _
    $region7: #{tpu_custom_call.1} parent=1 // pred_check_branch
      %28 = sbr.rel (0) target = $region9
    $region8: #{tpu_custom_call.1} parent=1 // pred_region
      %s29 = sadd.s32 0, 0
      %p30 = scmp.lt.s32.totalorder %s29, 0
      %s31 = scalar_select %p30, %s29, 0
      %33 = vsyncadd [#allocation7], 0
      %s34 = smul.addr %s31, 8
      %s35 = scalar_lea.hbm %s1, %s34
      %s37 = sshll.u32 %s35, 4
      %s38 = int_to_ptr.hbm [resolvable:$true] %s37
      %s39 = sshll.u32 [#allocation6], 4
      %s40 = int_to_ptr.vmem [resolvable:$true] %s39
      %42 = dma.hbm_to_vmem [thread:$0]  %s38, 128, %s40, [#allocation7]
    $region9: #{tpu_custom_call.1} parent=1 // pred_fallthru
      _
    // Predicated region
    $region10: #{tpu_custom_call.1} parent=1 // pred_check
      _
    $region11: #{tpu_custom_call.1} parent=1 // pred_check_branch
      %44 = sbr.rel (0) target = $region13
    $region12: #{tpu_custom_call.1} parent=1 // pred_region
      %s45 = sadd.s32 0, 0
      %p46 = scmp.lt.s32.totalorder %s45, 0
      %s47 = scalar_select %p46, %s45, 0
      %49 = vsyncadd [#allocation7], 0
      %s50 = smul.addr %s47, 8
      %s51 = scalar_lea.hbm %s2, %s50
      %s53 = sshll.u32 %s51, 4
      %s54 = int_to_ptr.hbm [resolvable:$true] %s53
      %s55 = sshll.u32 [#allocation8], 4
      %s56 = int_to_ptr.vmem [resolvable:$true] %s55
      %58 = dma.hbm_to_vmem [thread:$0]  %s54, 128, %s56, [#allocation7]
    $region13: #{tpu_custom_call.1} parent=1 // pred_fallthru
      _
    // Predicated region
    $region14: #{tpu_custom_call.1} parent=1 // pred_check
      _
    $region15: #{tpu_custom_call.1} parent=1 // pred_check_branch
      %60 = sbr.rel (0) target = $region17
    $region16: #{tpu_custom_call.1} parent=1 // pred_region
      %62 = dma.done [#allocation4], 128
    $region17: #{tpu_custom_call.1} parent=1 // pred_fallthru
      _
    // Predicated region
    $region18: #{tpu_custom_call.1} parent=1 // pred_check
      _
    $region19: #{tpu_custom_call.1} parent=1 // pred_check_branch
      %64 = sbr.rel (0) target = $region21
    $region20: #{tpu_custom_call.1} parent=1 // pred_region
      %66 = dma.done [#allocation7], 128
    $region21: #{tpu_custom_call.1} parent=1 // pred_fallthru
      _
    // Predicated region
    $region22: #{tpu_custom_call.1} parent=1 // pred_check
      _
    $region23: #{tpu_custom_call.1} parent=1 // pred_check_branch
      %68 = sbr.rel (0) target = $region25
    $region24: #{tpu_custom_call.1} parent=1 // pred_region
      %70 = dma.done [#allocation7], 128
    $region25: #{tpu_custom_call.1} parent=1 // pred_fallthru
      _
    %s71 = sadd.s32 0, 0
    %p72 = scmp.lt.s32.totalorder %s71, 0
    %s73 = scalar_select %p72, %s71, 0
    %s74 = sadd.s32 0, 0
    %p75 = scmp.lt.s32.totalorder %s74, 0
    %s76 = scalar_select %p75, %s74, 0
    %s77 = sadd.s32 0, 0
    %p78 = scmp.lt.s32.totalorder %s77, 0
    %s79 = scalar_select %p78, %s77, 0
    %p80 = scmp.eq.s32.totalorder 0, 0
    // Predicated region
    $region26: #{tpu_custom_call.1} parent=1 // pred_check
      %p81 = pneg %p80
    $region27: #{tpu_custom_call.1} parent=1 // pred_check_branch
      %83 = sbr.rel (%p81) target = $region29
    $region28: #{tpu_custom_call.1} parent=1 // pred_region
      %vm84 = vcmask 7168
      %85 = vst.msk [vmem:[#allocation2] sm:$0xff] %vm84, 0.0
    $region29: #{tpu_custom_call.1} parent=1 // pred_fallthru
      _
    %v86 = vld [vmem:[#allocation3] sm:$0xff]
    %v87 = vld [vmem:[#allocation6] sm:$0xff]
    %v88 = vld [vmem:[#allocation8] sm:$0xff]
    %v89 = vsub.f32 %v87, %v88
    %v90 = vadd.f32 %v87, %v88
    %v91 = vmul.f32 %v86, 2.0
    %v92 = vsub.f32 %v90, %v91
    %v93 = vmul.f32 %v89, %v92
    %vm94 = vcmask 261120
    %v95 = vsel %vm94, %v93, 0.0
    %96 = vadd.xlane.f32.xlu0 %v95
    %v97 = vpop.xlane.xlu0 %96
    %v98 = vadd.f32 %v97, 1.0
    %v99 = vmax.f32 %v98, 0.0
    %v100 = vld [vmem:[#allocation2] sm:$0xff]
    %v101 = vadd.f32 %v100, %v99
    %vm102 = vcmask 7168
    %103 = vst.msk [vmem:[#allocation2] sm:$0xff] %vm102, %v101
    // Predicated region
    $region30: #{tpu_custom_call.1} parent=1 // pred_check
      %p104 = pneg %p80
    $region31: #{tpu_custom_call.1} parent=1 // pred_check_branch
      %106 = sbr.rel (%p104) target = $region33
    $region32: #{tpu_custom_call.1} parent=1 // pred_region
      %v107 = vld [vmem:[#allocation2] sm:$0xff]
      %v108 = vsel %vm102, %v107, 0.0
      %v109 = vrot.slane %v108, 4
      %v110 = vadd.f32 %v108, %v109
      %v111 = vrot.slane %v110, 2
      %v112 = vadd.f32 %v110, %v111
      %v113 = vrot.slane %v112, 1
      %v114 = vadd.f32 %v112, %v113
      %116 = vset.pattern.permute.xlu0 0
      %117 = vperm.xlu0 %116, %v114
      %v118 = vpop.permute.xlu0 %117
      %120 = vst [vmem:[#allocation9] sm:$0xff] %v118
    $region33: #{tpu_custom_call.1} parent=1 // pred_fallthru
      _
    // Predicated region
    $region34: #{tpu_custom_call.1} parent=1 // pred_check
      _
    $region35: #{tpu_custom_call.1} parent=1 // pred_check_branch
      %122 = sbr.rel (0) target = $region37
    $region36: #{tpu_custom_call.1} parent=1 // pred_region
      %124 = vsyncadd [#allocation5], 0
      %s126 = sshll.u32 [#allocation9], 4
      %s127 = int_to_ptr.vmem [resolvable:$true] %s126
      %s128 = sshll.u32 %s3, 4
      %s129 = int_to_ptr.hbm [resolvable:$true] %s128
      %131 = dma.vmem_to_hbm [thread:$0]  %s127, 128, %s129, [#allocation5]
    $region37: #{tpu_custom_call.1} parent=1 // pred_fallthru
      _
    // Predicated region
    $region38: #{tpu_custom_call.1} parent=1 // pred_check
      _
    $region39: #{tpu_custom_call.1} parent=1 // pred_check_branch
      %133 = sbr.rel (0) target = $region41
    $region40: #{tpu_custom_call.1} parent=1 // pred_region
      %135 = dma.done [#allocation5], 128
    $region41: #{tpu_custom_call.1} parent=1 // pred_fallthru
      _
    %136 = vsyncpa [#allocation4], 1
    %137 = vsyncpa [#allocation7], 1
    %138 = vsyncpa [#allocation5], 1

</llo_original>
